<compile_context>
chip_gen: v5e
topology: v5e:2x2
jax: 0.10.0
libtpu: 0.0.40
codegen_flags: <defaults>
</compile_context>

<pallas_src>
import functools

import jax
import jax.numpy as jnp
from jax import lax
from jax.experimental import pallas as pl
from jax.experimental.pallas import tpu as pltpu

TN = 128          # lane width (fixed)
SUB = 8           # f32 sublanes per vreg
ROW_PAD = 16      # pad rows to a multiple of 16 (safe for bf16/f16 packing too)
TM_MAX = 2048     # rows per grid step: 2048*128*4B = 1 MiB / input / buffer
NC = 2            # leading "parallel" grid axis (both TensorCores on v7x)
VMEM_LIMIT = 48 * 1024 * 1024   # headroom for temps + double buffers, < physical on all chips


def _dice_bce_kernel(x_ref, t_ref, part_ref, *,
                     block_rows, steps_per_core, num_blocks, rows_last):
    """Accumulate per-core partial sums into the resident (4*SUB, TN) output block.

    Sublane rows [0:8)  = sum(p*t)   (intersection)
                 [8:16) = sum(p)
                 [16:24)= sum(t)
                 [24:32)= sum(bce)
    """
    c = pl.program_id(0)                  # "parallel" axis (core on v7x)
    i = pl.program_id(1)                  # sequential row-block axis per core
    b = c * steps_per_core + i            # global row-block index

    @pl.when(i == 0)
    def _init():
        part_ref[...] = jnp.zeros_like(part_ref)

    x = x_ref[...].astype(jnp.float32)
    t = t_ref[...].astype(jnp.float32)

    # Logit-space sigmoid / BCE with one exp + one log1p per element:
    #   softplus(x)  = max(x, 0) + log1p(exp(-|x|))     (= -log(1 - p))
    #   softplus(-x) = softplus(x) - x                  (= -log(p))
    #   sigmoid(x)   = 1/(1+e) if x >= 0 else e/(1+e),  e = exp(-|x|)
    e = jnp.exp(-jnp.abs(x))
    sp_pos = jnp.maximum(x, 0.0) + jnp.log1p(e)
    sp_neg = sp_pos - x
    r = 1.0 / (1.0 + e)
    p = jnp.where(x >= 0.0, r, e * r)
    # torch F.binary_cross_entropy clamps the individual log terms at -100.
    log_p = jnp.maximum(-sp_neg, -100.0)
    log_1mp = jnp.maximum(-sp_pos, -100.0)
    # -(t*log_p + (1-t)*log_1mp) == t*(log_1mp - log_p) - log_1mp
    bce = t * (log_1mp - log_p) - log_1mp

    def vfold(v):
        # (block_rows, TN) -> (SUB, TN) via pure vreg-wise adds (no XLU work).
        return v.reshape(block_rows // SUB, SUB, TN).sum(axis=0)

    def accumulate(p_, t_, bce_):
        part_ref[0 * SUB:1 * SUB, :] += vfold(p_ * t_)   # intersection
        part_ref[1 * SUB:2 * SUB, :] += vfold(p_)        # sum(p)
        part_ref[2 * SUB:3 * SUB, :] += vfold(t_)        # sum(t)
        part_ref[3 * SUB:4 * SUB, :] += vfold(bce_)      # sum(bce)

    ragged = rows_last < block_rows            # static python bool
    num_full = num_blocks - 1 if ragged else num_blocks

    @pl.when(b < num_full)                     # hot path: no masking at all
    def _full():
        accumulate(p, t, bce)

    if ragged:
        @pl.when(b == num_blocks - 1)          # only the ragged tail block pays
        def _tail():
            row = lax.broadcasted_iota(jnp.int32, (block_rows, TN), 0)
            valid = row < rows_last
            zero = jnp.zeros_like(p)
            accumulate(jnp.where(valid, p, zero),
                       jnp.where(valid, t, zero),
                       jnp.where(valid, bce, zero))
    # Phantom steps (b >= num_blocks, when num_blocks % NC != 0) skip both
    # branches; their clamped input block is read but ignored.


@jax.jit
def dice_bce_loss(inputs, targets, smooth=1.0):
    """inputs: logits (any shape, e.g. NCHW); targets: same shape in [0, 1]."""
    n = inputs.size
    x = inputs.reshape(-1)
    t = targets.reshape(-1)

    # Pad (only if needed) to a multiple of 16*128 with "neutral" values:
    # logit -1e4 -> p = 0 and bce = 0 (target 0), so the padded tail
    # contributes exactly zero to every partial sum.
    chunk = ROW_PAD * TN
    rem = n % chunk
    if rem:
        pad = chunk - rem
        x = jnp.concatenate([x, jnp.full((pad,), -1e4, dtype=x.dtype)])
        t = jnp.concatenate([t, jnp.zeros((pad,), dtype=t.dtype)])

    rows = x.shape[0] // TN
    x2 = x.reshape(rows, TN)
    t2 = t.reshape(rows, TN)

    block_rows = min(TM_MAX, rows)                 # multiple of 16 by padding
    num_blocks = pl.cdiv(rows, block_rows)
    steps_per_core = pl.cdiv(num_blocks, NC)
    rows_last = rows - (num_blocks - 1) * block_rows

    kernel = functools.partial(
        _dice_bce_kernel,
        block_rows=block_rows,
        steps_per_core=steps_per_core,
        num_blocks=num_blocks,
        rows_last=rows_last)

    def in_idx(c, i):
        # Clamp phantom steps (when num_blocks % NC != 0) to a valid block;
        # the kernel skips their accumulation.
        return (jnp.minimum(c * steps_per_core + i, num_blocks - 1), 0)

    parts = pl.pallas_call(
        kernel,
        out_shape=jax.ShapeDtypeStruct((NC * 4 * SUB, TN), jnp.float32),
        grid_spec=pltpu.PrefetchScalarGridSpec(
            num_scalar_prefetch=0,
            grid=(NC, steps_per_core),
            in_specs=[pl.BlockSpec((block_rows, TN), in_idx),
                      pl.BlockSpec((block_rows, TN), in_idx)],
            out_specs=pl.BlockSpec((4 * SUB, TN), lambda c, i: (c, 0)),
        ),
        compiler_params=pltpu.CompilerParams(
            dimension_semantics=("parallel", "arbitrary"),
            vmem_limit_bytes=VMEM_LIMIT),
    )(x2, t2)

    # Tiny final combine (NC * 4 * 8 * 128 f32) in plain JAX.
    sums = parts.reshape(NC, 4, SUB, TN).sum(axis=(0, 2, 3))   # (4,)
    intersection, sum_p, sum_t, sum_bce = sums[0], sums[1], sums[2], sums[3]
    dice_loss = 1.0 - (2.0 * intersection + smooth) / (sum_p + sum_t + smooth)
    bce_mean = sum_bce / jnp.float32(n)
    return bce_mean + dice_loss


def _reference(inputs, targets, smooth=1.0):
    p = jax.nn.sigmoid(inputs.astype(jnp.float32)).reshape(-1)
    t = targets.astype(jnp.float32).reshape(-1)
    intersection = jnp.sum(p * t)
    dice_loss = 1.0 - (2.0 * intersection + smooth) / (jnp.sum(p) + jnp.sum(t) + smooth)
    log_p = jnp.maximum(jnp.log(p), -100.0)
    log_1mp = jnp.maximum(jnp.log1p(-p), -100.0)
    bce = jnp.mean(-(t * log_p + (1.0 - t) * log_1mp))
    return bce + dice_loss


if __name__ == "__main__":
    key = jax.random.PRNGKey(0)
    k1, k2, k3, k4 = jax.random.split(key, 4)

    # Small NCHW case: exactly one 16x128 block, phantom step on core 1.
    inputs = jax.random.normal(k1, (2, 4, 16, 16), dtype=jnp.float32)      # logits
    targets = jax.random.bernoulli(k2, 0.5, (2, 4, 16, 16)).astype(jnp.float32)
    loss = jax.block_until_ready(dice_bce_loss(inputs, targets))
    ref = _reference(inputs, targets)
    assert jnp.allclose(loss, ref, rtol=5e-4, atol=1e-5), (loss, ref)

    # Larger case exercising flat padding, multiple blocks per core, the
    # ragged tail block and an odd block count (phantom step on core 1).
    inputs2 = jax.random.normal(k3, (2, 4, 300, 300), dtype=jnp.float32)
    targets2 = jax.random.bernoulli(k4, 0.5, (2, 4, 300, 300)).astype(jnp.float32)
    loss2 = jax.block_until_ready(dice_bce_loss(inputs2, targets2))
    ref2 = _reference(inputs2, targets2)
    assert jnp.allclose(loss2, ref2, rtol=5e-4, atol=1e-5), (loss2, ref2)

    print("KERNEL_OK")
</pallas_src>

<mosaic_0001>
module attributes {stable_mosaic.version = 11 : i64} {
  func.func @_dice_bce_kernel(%arg0: i32, %arg1: i32, %arg2: memref<16x128xf32, #tpu.memory_space<vmem>>, %arg3: memref<16x128xf32, #tpu.memory_space<vmem>>, %arg4: memref<32x128xf32, #tpu.memory_space<vmem>>) attributes {dimension_semantics = [#tpu.dimension_semantics<parallel>, #tpu.dimension_semantics<arbitrary>], iteration_bounds = array<i64: 2, 1>, scalar_prefetch = 0 : i64, scratch_operands = 0 : i64, tpu.core_type = #tpu.core_type<tc>, window_params = [{transform_indices = @transform_0, window_bounds = array<i64: 16, 128>}, {transform_indices = @transform_1, window_bounds = array<i64: 16, 128>}, {transform_indices = @transform_2, window_bounds = array<i64: 32, 128>}]} {
    %c1_i32 = arith.constant 1 : i32
    %0 = arith.muli %arg0, %c1_i32 : i32
    %1 = arith.addi %0, %arg1 : i32
    %c0_i32 = arith.constant 0 : i32
    %2 = arith.cmpi eq, %arg1, %c0_i32 : i32
    %3 = arith.extui %2 : i1 to i32
    %c0_i32_0 = arith.constant 0 : i32
    %4 = arith.cmpi ne, %3, %c0_i32_0 : i32
    scf.if %4 {
      %cst_14 = arith.constant 0.000000e+00 : f32
      %38 = vector.broadcast %cst_14 : f32 to vector<32x128xf32>
      %c0_15 = arith.constant 0 : index
      %c0_16 = arith.constant 0 : index
      %39 = vector.load %arg4[%c0_15, %c0_16] : memref<32x128xf32, #tpu.memory_space<vmem>>, vector<32x128xf32>
      tpu.vector_store %arg4[%c0_15, %c0_16], %38 {strides = array<i32>} : memref<32x128xf32, #tpu.memory_space<vmem>>, vector<32x128xf32>,
    } else {
    }
    %c0 = arith.constant 0 : index
    %c0_1 = arith.constant 0 : index
    %5 = vector.load %arg2[%c0, %c0_1] : memref<16x128xf32, #tpu.memory_space<vmem>>, vector<16x128xf32>
    %c0_2 = arith.constant 0 : index
    %c0_3 = arith.constant 0 : index
    %6 = vector.load %arg3[%c0_2, %c0_3] : memref<16x128xf32, #tpu.memory_space<vmem>>, vector<16x128xf32>
    %7 = math.absf %5 : vector<16x128xf32>
    %cst = arith.constant 0.000000e+00 : f32
    %8 = vector.broadcast %cst : f32 to vector<16x128xf32>
    %9 = arith.subf %8, %7 : vector<16x128xf32>
    %10 = math.exp %9 : vector<16x128xf32>
    %cst_4 = arith.constant 0.000000e+00 : f32
    %11 = vector.broadcast %cst_4 : f32 to vector<16x128xf32>
    %12 = arith.maximumf %5, %11 : vector<16x128xf32>
    %13 = math.log1p %10 : vector<16x128xf32>
    %14 = arith.addf %12, %13 : vector<16x128xf32>
    %15 = arith.subf %14, %5 : vector<16x128xf32>
    %cst_5 = arith.constant 1.000000e+00 : f32
    %16 = vector.broadcast %cst_5 : f32 to vector<16x128xf32>
    %17 = arith.addf %16, %10 : vector<16x128xf32>
    %cst_6 = arith.constant 1.000000e+00 : f32
    %18 = vector.broadcast %cst_6 : f32 to vector<16x128xf32>
    %19 = arith.divf %18, %17 : vector<16x128xf32>
    %cst_7 = arith.constant 0.000000e+00 : f32
    %20 = vector.broadcast %cst_7 : f32 to vector<16x128xf32>
    %21 = arith.cmpf oge, %5, %20 : vector<16x128xf32>
    %22 = arith.mulf %10, %19 : vector<16x128xf32>
    %23 = arith.select %21, %19, %22 : vector<16x128xi1>, vector<16x128xf32>
    %cst_8 = arith.constant 0.000000e+00 : f32
    %24 = vector.broadcast %cst_8 : f32 to vector<16x128xf32>
    %25 = arith.subf %24, %15 : vector<16x128xf32>
    %cst_9 = arith.constant -1.000000e+02 : f32
    %26 = vector.broadcast %cst_9 : f32 to vector<16x128xf32>
    %27 = arith.maximumf %25, %26 : vector<16x128xf32>
    %cst_10 = arith.constant 0.000000e+00 : f32
    %28 = vector.broadcast %cst_10 : f32 to vector<16x128xf32>
    %29 = arith.subf %28, %14 : vector<16x128xf32>
    %cst_11 = arith.constant -1.000000e+02 : f32
    %30 = vector.broadcast %cst_11 : f32 to vector<16x128xf32>
    %31 = arith.maximumf %29, %30 : vector<16x128xf32>
    %32 = arith.subf %31, %27 : vector<16x128xf32>
    %33 = arith.mulf %6, %32 : vector<16x128xf32>
    %34 = arith.subf %33, %31 : vector<16x128xf32>
    %c1_i32_12 = arith.constant 1 : i32
    %35 = arith.cmpi slt, %1, %c1_i32_12 : i32
    %36 = arith.extui %35 : i1 to i32
    %c0_i32_13 = arith.constant 0 : i32
    %37 = arith.cmpi ne, %36, %c0_i32_13 : i32
    scf.if %37 {
      %c0_14 = arith.constant 0 : index
      %c0_15 = arith.constant 0 : index
      %38 = vector.load %arg4[%c0_14, %c0_15] : memref<32x128xf32, #tpu.memory_space<vmem>>, vector<8x128xf32>
      %39 = arith.mulf %23, %6 : vector<16x128xf32>
      %40 = vector.shape_cast %39 : vector<16x128xf32> to vector<2x8x128xf32>
      %cst_16 = arith.constant dense<0.000000e+00> : vector<8x128xf32>
      %41 = vector.multi_reduction <add>, %40, %cst_16 [0] : vector<2x8x128xf32> to vector<8x128xf32>
      %42 = arith.addf %38, %41 : vector<8x128xf32>
      %c0_17 = arith.constant 0 : index
      %c0_18 = arith.constant 0 : index
      %43 = vector.load %arg4[%c0_17, %c0_18] : memref<32x128xf32, #tpu.memory_space<vmem>>, vector<8x128xf32>
      tpu.vector_store %arg4[%c0_17, %c0_18], %42 {strides = array<i32>} : memref<32x128xf32, #tpu.memory_space<vmem>>, vector<8x128xf32>,
      %c8 = arith.constant 8 : index
      %c0_19 = arith.constant 0 : index
      %44 = vector.load %arg4[%c8, %c0_19] : memref<32x128xf32, #tpu.memory_space<vmem>>, vector<8x128xf32>
      %45 = vector.shape_cast %23 : vector<16x128xf32> to vector<2x8x128xf32>
      %cst_20 = arith.constant dense<0.000000e+00> : vector<8x128xf32>
      %46 = vector.multi_reduction <add>, %45, %cst_20 [0] : vector<2x8x128xf32> to vector<8x128xf32>
      %47 = arith.addf %44, %46 : vector<8x128xf32>
      %c8_21 = arith.constant 8 : index
      %c0_22 = arith.constant 0 : index
      %48 = vector.load %arg4[%c8_21, %c0_22] : memref<32x128xf32, #tpu.memory_space<vmem>>, vector<8x128xf32>
      tpu.vector_store %arg4[%c8_21, %c0_22], %47 {strides = array<i32>} : memref<32x128xf32, #tpu.memory_space<vmem>>, vector<8x128xf32>,
      %c16 = arith.constant 16 : index
      %c0_23 = arith.constant 0 : index
      %49 = vector.load %arg4[%c16, %c0_23] : memref<32x128xf32, #tpu.memory_space<vmem>>, vector<8x128xf32>
      %50 = vector.shape_cast %6 : vector<16x128xf32> to vector<2x8x128xf32>
      %cst_24 = arith.constant dense<0.000000e+00> : vector<8x128xf32>
      %51 = vector.multi_reduction <add>, %50, %cst_24 [0] : vector<2x8x128xf32> to vector<8x128xf32>
      %52 = arith.addf %49, %51 : vector<8x128xf32>
      %c16_25 = arith.constant 16 : index
      %c0_26 = arith.constant 0 : index
      %53 = vector.load %arg4[%c16_25, %c0_26] : memref<32x128xf32, #tpu.memory_space<vmem>>, vector<8x128xf32>
      tpu.vector_store %arg4[%c16_25, %c0_26], %52 {strides = array<i32>} : memref<32x128xf32, #tpu.memory_space<vmem>>, vector<8x128xf32>,
      %c24 = arith.constant 24 : index
      %c0_27 = arith.constant 0 : index
      %54 = vector.load %arg4[%c24, %c0_27] : memref<32x128xf32, #tpu.memory_space<vmem>>, vector<8x128xf32>
      %55 = vector.shape_cast %34 : vector<16x128xf32> to vector<2x8x128xf32>
      %cst_28 = arith.constant dense<0.000000e+00> : vector<8x128xf32>
      %56 = vector.multi_reduction <add>, %55, %cst_28 [0] : vector<2x8x128xf32> to vector<8x128xf32>
      %57 = arith.addf %54, %56 : vector<8x128xf32>
      %c24_29 = arith.constant 24 : index
      %c0_30 = arith.constant 0 : index
      %58 = vector.load %arg4[%c24_29, %c0_30] : memref<32x128xf32, #tpu.memory_space<vmem>>, vector<8x128xf32>
      tpu.vector_store %arg4[%c24_29, %c0_30], %57 {strides = array<i32>} : memref<32x128xf32, #tpu.memory_space<vmem>>, vector<8x128xf32>,
    } else {
    }
    return
  }
  func.func @transform_0(%arg0: i32, %arg1: i32) -> (i32, i32) {
    %c1_i32 = arith.constant 1 : i32
    %0 = arith.muli %arg0, %c1_i32 : i32
    %1 = arith.addi %0, %arg1 : i32
    %c0_i32 = arith.constant 0 : i32
    %2 = arith.minsi %1, %c0_i32 : i32
    %c0_i32_0 = arith.constant 0 : i32
    %c0_i32_1 = arith.constant 0 : i32
    return %2, %c0_i32_0 : i32, i32
  }
  func.func @transform_1(%arg0: i32, %arg1: i32) -> (i32, i32) {
    %c1_i32 = arith.constant 1 : i32
    %0 = arith.muli %arg0, %c1_i32 : i32
    %1 = arith.addi %0, %arg1 : i32
    %c0_i32 = arith.constant 0 : i32
    %2 = arith.minsi %1, %c0_i32 : i32
    %c0_i32_0 = arith.constant 0 : i32
    %c0_i32_1 = arith.constant 0 : i32
    return %2, %c0_i32_0 : i32, i32
  }
  func.func @transform_2(%arg0: i32, %arg1: i32) -> (i32, i32) {
    %c0_i32 = arith.constant 0 : i32
    %c0_i32_0 = arith.constant 0 : i32
    return %arg0, %c0_i32 : i32, i32
  }
}

</mosaic_0001>

<llo_original>
// kernel: dice_bce_loss.1
$region0: #{dice_bce_loss.1}
  #allocation0 [shape = 'u32[]', space=smem, size = 0x4, offset = 0x4, fixed_abs, tag = 'smem constant byte address 0x4 - core index']
  #allocation1 [shape = 'u32[72,128]{1,0:T(1,128)}', space=vmem, size = 0x9000, scoped, tag = 'internal scratch']
  %s0 = inlined_call_operand.vmem [shape: f32[16,128], index: 0, kind: input, shape index: {}]
  %s1 = inlined_call_operand.vmem [shape: f32[16,128], index: 1, kind: input, shape index: {}]
  %s2 = inlined_call_operand.vmem [shape: f32[64,128], index: 2, kind: output, shape index: {}]
  %s3 = sld [smem:[#allocation0]]
  $region49: #{dice_bce_loss.1} parent=0
    _
  %s5 = ssub.s32 1, %s3
  %s6 = scalar_select 0, %s5, %s3
  loop: start=0, step=1, limit=4
  $region2: #{dice_bce_loss.1} parent=0 // loop_pre_header
    _
  $region3: #{dice_bce_loss.1} parent=0 // loop_header
    %s8 = sphi 0, %s12
    %p9 = scmp.ge.s32.totalorder %s8, 4
    %s15 = sphi 0, %s27
    %s16 = sphi 0, %s23
    %s17 = sphi 0, %s15
    %s18 = sphi 0, %s16
    %s19 = sphi 0, %s17
    %s20 = sphi 0, %s18
    %s36 = sphi 0, %s38
    %s39 = sphi 0, %s36
    %s40 = sphi 0, %s39
    %s56 = sphi 0, %s40
    %s68 = sphi 0, %s70
    %s71 = sphi 0, %s68
    %s72 = sphi 0, %s71
    %s88 = sphi 0, %s72
    %s94 = sphi 0, %s96
    %s97 = sphi 0, %s94
    %s98 = sphi 0, %s97
    %s114 = sphi 0, %s98
  $region4: #{dice_bce_loss.1} parent=0 // loop_header_branch
    %11 = sbr.rel (%p9) target = $region8
  $region5: #{dice_bce_loss.1} parent=0 // loop_body
    %s13 = ssub.s32 %s8, 1
    %s14 = ssub.s32 %s8, 2
    %s21 = sadd.s32 1, %s16
    %p22 = scmp.ge.s32.totalorder %s21, 1
    %s23 = scalar_select %p22, 0, %s21
    %s24 = sadd.s32 1, %s15
    %s25 = scalar_select %p22, %s24, %s15
    %p26 = scmp.ge.s32.totalorder %s25, 2
    %s27 = scalar_select %p26, 0, %s25
    %s28 = sadd.s32 %s15, %s16
    %p29 = scmp.lt.s32.totalorder %s28, 0
    %s30 = scalar_select %p29, %s28, 0
    %s31 = sadd.s32 %s27, %s23
    %p32 = scmp.lt.s32.totalorder %s31, 0
    %s33 = scalar_select %p32, %s31, 0
    %s34 = ssub.s32 %s30, %s33
    %p35 = scmp.eq.s32.totalorder %s34, 0
    %s37 = sadd.s32 %s36, 1
    %s38 = scalar_select %p35, %s36, %s37
    %p41 = pneg %p35
    %p42 = scmp.eq.s32.totalorder %s8, 1
    %p43 = por %p41, %p42
    %p44 = scmp.ne.s32.totalorder %s36, %s39
    %p45 = scmp.eq.s32.totalorder %s8, 0
    %p46 = por %p44, %p45
    %p47 = scmp.ne.s32.totalorder %s36, %s39
    %p48 = scmp.eq.s32.totalorder %s13, 1
    %p49 = por %p47, %p48
    %p50 = scmp.ne.s32.totalorder %s39, %s40
    %p51 = scmp.eq.s32.totalorder %s13, 0
    %p52 = por %p50, %p51
    %p53 = scmp.ne.s32.totalorder %s39, %s40
    %p54 = scmp.eq.s32.totalorder %s14, 1
    %p55 = por %p53, %p54
    %p57 = scmp.ne.s32.totalorder %s40, %s56
    %p58 = scmp.eq.s32.totalorder %s14, 0
    %p59 = por %p57, %p58
    %s60 = sadd.s32 %s15, %s16
    %p61 = scmp.lt.s32.totalorder %s60, 0
    %s62 = scalar_select %p61, %s60, 0
    %s63 = sadd.s32 %s27, %s23
    %p64 = scmp.lt.s32.totalorder %s63, 0
    %s65 = scalar_select %p64, %s63, 0
    %s66 = ssub.s32 %s62, %s65
    %p67 = scmp.eq.s32.totalorder %s66, 0
    %s69 = sadd.s32 %s68, 1
    %s70 = scalar_select %p67, %s68, %s69
    %p73 = pneg %p67
    %p74 = scmp.eq.s32.totalorder %s8, 1
    %p75 = por %p73, %p74
    %p76 = scmp.ne.s32.totalorder %s68, %s71
    %p77 = scmp.eq.s32.totalorder %s8, 0
    %p78 = por %p76, %p77
    %p79 = scmp.ne.s32.totalorder %s68, %s71
    %p80 = scmp.eq.s32.totalorder %s13, 1
    %p81 = por %p79, %p80
    %p82 = scmp.ne.s32.totalorder %s71, %s72
    %p83 = scmp.eq.s32.totalorder %s13, 0
    %p84 = por %p82, %p83
    %p85 = scmp.ne.s32.totalorder %s71, %s72
    %p86 = scmp.eq.s32.totalorder %s14, 1
    %p87 = por %p85, %p86
    %p89 = scmp.ne.s32.totalorder %s72, %s88
    %p90 = scmp.eq.s32.totalorder %s14, 0
    %p91 = por %p89, %p90
    %s92 = ssub.s32 %s15, %s27
    %p93 = scmp.eq.s32.totalorder %s92, 0
    %s95 = sadd.s32 %s94, 1
    %s96 = scalar_select %p93, %s94, %s95
    %p99 = pneg %p93
    %p100 = scmp.eq.s32.totalorder %s8, 1
    %p101 = por %p99, %p100
    %p102 = scmp.ne.s32.totalorder %s94, %s97
    %p103 = scmp.eq.s32.totalorder %s8, 0
    %p104 = por %p102, %p103
    %p105 = scmp.ne.s32.totalorder %s94, %s97
    %p106 = scmp.eq.s32.totalorder %s13, 1
    %p107 = por %p105, %p106
    %p108 = scmp.ne.s32.totalorder %s97, %s98
    %p109 = scmp.eq.s32.totalorder %s13, 0
    %p110 = por %p108, %p109
    %p111 = scmp.ne.s32.totalorder %s97, %s98
    %p112 = scmp.eq.s32.totalorder %s14, 1
    %p113 = por %p111, %p112
    %p115 = scmp.ne.s32.totalorder %s98, %s114
    %p116 = scmp.eq.s32.totalorder %s14, 0
    %p117 = por %p115, %p116
    %p118 = scmp.le.s32.totalorder 1, %s8
    %p119 = scmp.lt.s32.totalorder %s8, 3
    %p120 = pnand %p118, %p119
    %p121 = pneg %p120
    // Predicated region
    $region9: #{dice_bce_loss.1} parent=5 // pred_check
      _
    $region10: #{dice_bce_loss.1} parent=5 // pred_check_branch
      %123 = sbr.rel (%p120) target = $region12
    $region11: #{dice_bce_loss.1} parent=5 // pred_region
      %s124 = ssub.s32 %s8, 1
    $region12: #{dice_bce_loss.1} parent=5 // pred_fallthru
      _
    %p125 = scmp.lt.s32.totalorder %s8, 2
    // Predicated region
    $region13: #{dice_bce_loss.1} parent=5 // pred_check
      %p126 = pneg %p125
    $region14: #{dice_bce_loss.1} parent=5 // pred_check_branch
      %128 = sbr.rel (%p126) target = $region16
    $region15: #{dice_bce_loss.1} parent=5 // pred_region
      // Predicated region
      $region17: #{dice_bce_loss.1} parent=15 // pred_check
        %p129 = pneg %p46
      $region18: #{dice_bce_loss.1} parent=15 // pred_check_branch
        %131 = sbr.rel (%p129) target = $region20
      $region19: #{dice_bce_loss.1} parent=15 // pred_region
        %s132 = sadd.s32 %s15, %s16
        %p133 = scmp.lt.s32.totalorder %s132, 0
        %s134 = scalar_select %p133, %s132, 0
        %s135 = smul.u32 2, %s134
        %p136 = scmp.lt.s32.totalorder %s135, 1
        %s137 = scalar_select %p136, %s135, 1
        %s138 = smul.addr %s137, 8
        %s139 = scalar_lea.vmem %s0, %s138
        %s140 = sadd.s32 %s15, %s16
        %p141 = scmp.lt.s32.totalorder %s140, 0
        %s142 = scalar_select %p141, %s140, 0
        %s143 = smul.u32 2, %s142
      $region20: #{dice_bce_loss.1} parent=15 // pred_fallthru
        _
      // Predicated region
      $region21: #{dice_bce_loss.1} parent=15 // pred_check
        %p144 = pneg %p78
      $region22: #{dice_bce_loss.1} parent=15 // pred_check_branch
        %146 = sbr.rel (%p144) target = $region24
      $region23: #{dice_bce_loss.1} parent=15 // pred_region
        %s147 = sadd.s32 %s15, %s16
        %p148 = scmp.lt.s32.totalorder %s147, 0
        %s149 = scalar_select %p148, %s147, 0
        %s150 = smul.u32 2, %s149
        %p151 = scmp.lt.s32.totalorder %s150, 1
        %s152 = scalar_select %p151, %s150, 1
        %s153 = smul.addr %s152, 8
        %s154 = scalar_lea.vmem %s1, %s153
        %s155 = sadd.s32 %s15, %s16
        %p156 = scmp.lt.s32.totalorder %s155, 0
        %s157 = scalar_select %p156, %s155, 0
        %s158 = smul.u32 2, %s157
      $region24: #{dice_bce_loss.1} parent=15 // pred_fallthru
        _
    $region16: #{dice_bce_loss.1} parent=5 // pred_fallthru
      _
    %p159 = scmp.le.s32.totalorder 1, %s8
    %p160 = scmp.lt.s32.totalorder %s8, 3
    %p161 = pnand %p159, %p160
    %p162 = pneg %p161
    // Predicated region
    $region25: #{dice_bce_loss.1} parent=5 // pred_check
      _
    $region26: #{dice_bce_loss.1} parent=5 // pred_check_branch
      %164 = sbr.rel (%p161) target = $region28
    $region27: #{dice_bce_loss.1} parent=5 // pred_region
      %s165 = ssub.s32 %s8, 1
      %s166 = sadd.s32 %s17, %s18
      %p167 = scmp.lt.s32.totalorder %s166, 0
      %s168 = scalar_select %p167, %s166, 0
      %s169 = smul.u32 2, %s168
      %p170 = scmp.lt.s32.totalorder %s169, 1
      %s171 = scalar_select %p170, %s169, 1
      %s172 = smul.addr %s171, 8
      %s173 = scalar_lea.vmem %s0, %s172
      %p174 = pneg %p52
      %p175 = pneg %p49
      %s176 = sadd.s32 %s17, %s18
      %p177 = scmp.lt.s32.totalorder %s176, 0
      %s178 = scalar_select %p177, %s176, 0
      %s179 = smul.u32 2, %s178
      %p180 = scmp.lt.s32.totalorder %s179, 1
      %s181 = scalar_select %p180, %s179, 1
      %s182 = smul.addr %s181, 8
      %s183 = scalar_lea.vmem %s1, %s182
      %p184 = pneg %p84
      %p185 = pneg %p81
      %p186 = pneg %p110
      %p187 = pneg %p107
      %s188 = smul.u32 4, %s17
      %p189 = scmp.lt.s32.totalorder %s188, 7
      %s190 = scalar_select %p189, %s188, 7
      %s191 = smul.addr %s190, 8
      %s192 = scalar_lea.vmem %s2, %s191
      %s193 = sadd.s32 %s17, %s18
      %p194 = scmp.lt.s32.totalorder %s193, 0
      %s195 = scalar_select %p194, %s193, 0
      %s196 = smul.u32 2, %s195
      %p197 = scmp.lt.s32.totalorder %s196, 1
      %s198 = scalar_select %p197, %s196, 1
      %s199 = smul.addr %s198, 8
      %s200 = scalar_lea.vmem %s0, %s199
      %s201 = sadd.s32 %s17, %s18
      %p202 = scmp.lt.s32.totalorder %s201, 0
      %s203 = scalar_select %p202, %s201, 0
      %s204 = smul.u32 2, %s203
      %s205 = sadd.s32 %s17, %s18
      %p206 = scmp.lt.s32.totalorder %s205, 0
      %s207 = scalar_select %p206, %s205, 0
      %s208 = smul.u32 2, %s207
      %p209 = scmp.lt.s32.totalorder %s208, 1
      %s210 = scalar_select %p209, %s208, 1
      %s211 = smul.addr %s210, 8
      %s212 = scalar_lea.vmem %s1, %s211
      %s213 = sadd.s32 %s17, %s18
      %p214 = scmp.lt.s32.totalorder %s213, 0
      %s215 = scalar_select %p214, %s213, 0
      %s216 = smul.u32 2, %s215
      %s217 = smul.u32 4, %s17
      %p218 = scmp.lt.s32.totalorder %s217, 7
      %s219 = scalar_select %p218, %s217, 7
      %s220 = smul.addr %s219, 8
      %s221 = scalar_lea.vmem %s2, %s220
      %s222 = smul.u32 4, %s17
      %s223 = sadd.s32 %s17, %s18
      %p224 = scmp.eq.s32.totalorder %s18, 0
      // Predicated region
      $region29: #{dice_bce_loss.1} parent=27 // pred_check
        %p225 = pneg %p224
      $region30: #{dice_bce_loss.1} parent=27 // pred_check_branch
        %227 = sbr.rel (%p225) target = $region32
      $region31: #{dice_bce_loss.1} parent=27 // pred_region
        %228 = vst [vmem:[%s221] sm:$0xff] 0.0
        %229 = vst [vmem:[%s221 + $0x8] sm:$0xff] 0.0
        %230 = vst [vmem:[%s221 + $0x10] sm:$0xff] 0.0
        %231 = vst [vmem:[%s221 + $0x18] sm:$0xff] 0.0
      $region32: #{dice_bce_loss.1} parent=27 // pred_fallthru
        _
      %v232 = vld [vmem:[%s200] sm:$0xff]
      %v233 = vld [vmem:[%s200 + $0x8] sm:$0xff]
      %v234 = vld [vmem:[%s212] sm:$0xff]
      %v235 = vld [vmem:[%s212 + $0x8] sm:$0xff]
      %v236 = vand.u32 2147483647, %v232
      %v237 = vand.u32 2147483647, %v233
      %v238 = vsub.f32 0.0, %v236
      %v239 = vsub.f32 0.0, %v237
      %v240 = vmul.f32 %v238, 1.442695
      %v241 = vpow.pop %v240
      %v242 = vmul.f32 %v239, 1.442695
      %v243 = vpow.pop %v242
      %v244 = vmax.f32 %v232, 0.0
      %v245 = vmax.f32 %v233, 0.0
      %v246 = vadd.f32 %v241, 1.0
      %v247 = vlog2.pop %v246
      %v248 = vmul.f32 %v247, 0.6931472
      %v249 = vmul.f32 -0.5, %v241
      %v250 = vadd.f32 %v249, 1.0
      %v251 = vmul.f32 %v250, %v241
      %v252 = vand.u32 2147483647, %v241
      %vm253 = vcmp.lt.f32.partialorder %v252, 0.0004427343
      %v254 = vsel %vm253, %v251, %v248
      %v255 = vadd.f32 %v243, 1.0
      %v256 = vlog2.pop %v255
      %v257 = vmul.f32 %v256, 0.6931472
      %v258 = vmul.f32 -0.5, %v243
      %v259 = vadd.f32 %v258, 1.0
      %v260 = vmul.f32 %v259, %v243
      %v261 = vand.u32 2147483647, %v243
      %vm262 = vcmp.lt.f32.partialorder %v261, 0.0004427343
      %v263 = vsel %vm262, %v260, %v257
      %v264 = vadd.f32 %v244, %v254
      %v265 = vadd.f32 %v245, %v263
      %v266 = vsub.f32 %v264, %v232
      %v267 = vsub.f32 %v265, %v233
      %v268 = vadd.f32 %v241, 1.0
      %v269 = vadd.f32 %v243, 1.0
      %v270 = vrcp.pop %v268
      %v271 = vmul.f32 %v268, %v270
      %v272 = vsub.f32 1.0, %v271
      %v273 = vmul.f32 %v270, %v272
      %v274 = vadd.f32 %v270, %v273
      %vm275 = vweird.f32 %v268
      %vm276 = vweird.f32 %v270
      %vm277 = vmor %vm275, %vm276
      %v278 = vsel %vm277, %v270, %v274
      %v279 = vand.u32 2147483647, %v268
      %vm280 = vcmp.eq.f32.partialorder %v279, 8.507059e+37
      %v281 = vand.u32 %v268, 2147483648
      %v282 = vor.u32 1.1754944e-38, %v281
      %v283 = vsel %vm280, %v282, %v278
      %v284 = vmul.f32 1.0, %v283
      %v285 = vrcp.pop %v269
      %v286 = vmul.f32 %v269, %v285
      %v287 = vsub.f32 1.0, %v286
      %v288 = vmul.f32 %v285, %v287
      %v289 = vadd.f32 %v285, %v288
      %vm290 = vweird.f32 %v269
      %vm291 = vweird.f32 %v285
      %vm292 = vmor %vm290, %vm291
      %v293 = vsel %vm292, %v285, %v289
      %v294 = vand.u32 2147483647, %v269
      %vm295 = vcmp.eq.f32.partialorder %v294, 8.507059e+37
      %v296 = vand.u32 %v269, 2147483648
      %v297 = vor.u32 1.1754944e-38, %v296
      %v298 = vsel %vm295, %v297, %v293
      %v299 = vmul.f32 1.0, %v298
      %vm300 = vcmp.ge.f32.partialorder %v232, 0.0
      %vm301 = vcmp.ge.f32.partialorder %v233, 0.0
      %v302 = vmul.f32 %v241, %v284
      %v303 = vmul.f32 %v243, %v299
      %v304 = vsel %vm300, %v284, %v302
      %v305 = vsel %vm301, %v299, %v303
      %v306 = vsub.f32 0.0, %v266
      %v307 = vsub.f32 0.0, %v267
      %v308 = vmax.f32 %v306, -100.0
      %v309 = vmax.f32 %v307, -100.0
      %v310 = vsub.f32 0.0, %v264
      %v311 = vsub.f32 0.0, %v265
      %v312 = vmax.f32 %v310, -100.0
      %v313 = vmax.f32 %v311, -100.0
      %v314 = vsub.f32 %v312, %v308
      %v315 = vsub.f32 %v313, %v309
      %v316 = vmul.f32 %v234, %v314
      %v317 = vmul.f32 %v235, %v315
      %v318 = vsub.f32 %v316, %v312
      %v319 = vsub.f32 %v317, %v313
      %p320 = scmp.lt.s32.totalorder %s223, 1
      // Predicated region
      $region33: #{dice_bce_loss.1} parent=27 // pred_check
        %p321 = pneg %p320
      $region34: #{dice_bce_loss.1} parent=27 // pred_check_branch
        %323 = sbr.rel (%p321) target = $region36
      $region35: #{dice_bce_loss.1} parent=27 // pred_region
        %v324 = vld [vmem:[%s221] sm:$0xff]
        %v325 = vmul.f32 %v304, %v234
        %v326 = vmul.f32 %v305, %v235
        %v327 = vadd.f32 %v325, %v326
        %v328 = vadd.f32 %v324, %v327
        %329 = vst [vmem:[%s221] sm:$0xff] %v328
        %v330 = vld [vmem:[%s221 + $0x8] sm:$0xff]
        %v331 = vadd.f32 %v304, %v305
        %v332 = vadd.f32 %v330, %v331
        %333 = vst [vmem:[%s221 + $0x8] sm:$0xff] %v332
        %v334 = vld [vmem:[%s221 + $0x10] sm:$0xff]
        %v335 = vadd.f32 %v234, %v235
        %v336 = vadd.f32 %v334, %v335
        %337 = vst [vmem:[%s221 + $0x10] sm:$0xff] %v336
        %v338 = vld [vmem:[%s221 + $0x18] sm:$0xff]
        %v339 = vadd.f32 %v318, %v319
        %v340 = vadd.f32 %v338, %v339
        %341 = vst [vmem:[%s221 + $0x18] sm:$0xff] %v340
      $region36: #{dice_bce_loss.1} parent=27 // pred_fallthru
        _
      %s342 = smul.u32 4, %s17
      %p343 = scmp.lt.s32.totalorder %s342, 7
      %s344 = scalar_select %p343, %s342, 7
      %s345 = smul.addr %s344, 8
      %s346 = scalar_lea.vmem %s2, %s345
      // Predicated region
      $region37: #{dice_bce_loss.1} parent=27 // pred_check
        %p347 = pneg %p107
      $region38: #{dice_bce_loss.1} parent=27 // pred_check_branch
        %349 = sbr.rel (%p347) target = $region40
      $region39: #{dice_bce_loss.1} parent=27 // pred_region
        %s350 = smul.u32 4, %s17
      $region40: #{dice_bce_loss.1} parent=27 // pred_fallthru
        _
    $region28: #{dice_bce_loss.1} parent=5 // pred_fallthru
      _
    %p351 = scmp.le.s32.totalorder 2, %s8
    // Predicated region
    $region41: #{dice_bce_loss.1} parent=5 // pred_check
      %p352 = pneg %p351
    $region42: #{dice_bce_loss.1} parent=5 // pred_check_branch
      %354 = sbr.rel (%p352) target = $region44
    $region43: #{dice_bce_loss.1} parent=5 // pred_region
      %s355 = ssub.s32 %s8, 2
      // Predicated region
      $region45: #{dice_bce_loss.1} parent=43 // pred_check
        %p356 = pneg %p113
      $region46: #{dice_bce_loss.1} parent=43 // pred_check_branch
        %358 = sbr.rel (%p356) target = $region48
      $region47: #{dice_bce_loss.1} parent=43 // pred_region
        %s359 = smul.u32 4, %s19
        %p360 = scmp.lt.s32.totalorder %s359, 7
        %s361 = scalar_select %p360, %s359, 7
        %s362 = smul.addr %s361, 8
        %s363 = scalar_lea.vmem %s2, %s362
      $region48: #{dice_bce_loss.1} parent=43 // pred_fallthru
        _
    $region44: #{dice_bce_loss.1} parent=5 // pred_fallthru
      _
  $region6: #{dice_bce_loss.1} parent=0 // loop_footer
    %s12 = sadd.s32 1, %s8
  $region7: #{dice_bce_loss.1} parent=0 // loop_footer_branch
    %7 = sbr.rel target = $region3
  $region8: #{dice_bce_loss.1} parent=0 // loop_exit
    _

</llo_original>
